<compile_context>
chip_gen: v7x
topology: tpu7x:2x2x1
jax: 0.10.0
libtpu: 0.0.40
codegen_flags: <defaults>
</compile_context>

<pallas_src>
import math

import jax
import jax.numpy as jnp
from jax import lax
from jax.experimental import pallas as pl
from jax.experimental.pallas import tpu as pltpu

_INV_SQRT2 = 1.0 / math.sqrt(2.0)


def _mlp_head_kernel(x_ref, w1_ref, b1_ref, w2_ref, b2_ref, o_ref):
    # Linear 1: (TB, base_dim) @ (base_dim, mid_dim) + (1, mid_dim), f32 accumulation.
    h = jnp.dot(x_ref[...], w1_ref[...], preferred_element_type=jnp.float32)
    h = h + b1_ref[...].astype(jnp.float32)

    # Dropout(p=0.2) in eval mode == identity.
    # TODO(synk): training-mode dropout (random mask + 1/(1-p) scaling) not implemented.

    # Exact GELU (PyTorch nn.GELU default, erf-based), computed in f32.
    h = 0.5 * h * (1.0 + lax.erf(h * _INV_SQRT2))

    # Linear 2: (TB, mid_dim) @ (mid_dim, num_classes) + (1, num_classes).
    out = jnp.dot(h, w2_ref[...].astype(jnp.float32),
                  preferred_element_type=jnp.float32)
    out = out + b2_ref[...].astype(jnp.float32)
    o_ref[...] = out.astype(o_ref.dtype)


def _round_up(n, m):
    return ((n + m - 1) // m) * m


@jax.jit
def classifier_head_2(x, mask, w1, b1, w2, b2):
    """Forward of ClassifierHead_2. `mask` is unused (matches the reference)."""
    del mask
    B, base_dim = x.shape
    mid_dim = w1.shape[1]
    num_classes = w2.shape[1]

    # Batch tile: big-but-fitting tiles for pipelining; keep sublane dim a multiple of 8.
    TB = min(1024, _round_up(B, 8))
    B_pad = _round_up(B, TB)
    if B_pad != B:
        x = jnp.pad(x, ((0, B_pad - B), (0, 0)))
    grid = (B_pad // TB,)

    # Advisory cost estimate (f32 sizes) so XLA can overlap this small custom call.
    flops = 2 * B_pad * base_dim * mid_dim + 2 * B_pad * mid_dim * num_classes
    bytes_accessed = 4 * (B_pad * base_dim + base_dim * mid_dim + mid_dim
                          + mid_dim * num_classes + num_classes
                          + B_pad * num_classes)
    cost = pl.CostEstimate(flops=flops,
                           transcendentals=B_pad * mid_dim,
                           bytes_accessed=bytes_accessed)

    out = pl.pallas_call(
        _mlp_head_kernel,
        out_shape=jax.ShapeDtypeStruct((B_pad, num_classes), x.dtype),
        grid_spec=pltpu.PrefetchScalarGridSpec(
            num_scalar_prefetch=0,
            grid=grid,
            in_specs=[
                # x: tiled along the batch (sublane) axis.
                pl.BlockSpec((TB, base_dim), lambda i: (i, 0)),
                # Weights/biases: constant index_map -> fetched once, VMEM-resident.
                pl.BlockSpec((base_dim, mid_dim), lambda i: (0, 0)),
                pl.BlockSpec((1, mid_dim), lambda i: (0, 0)),
                pl.BlockSpec((mid_dim, num_classes), lambda i: (0, 0)),
                pl.BlockSpec((1, num_classes), lambda i: (0, 0)),
            ],
            out_specs=pl.BlockSpec((TB, num_classes), lambda i: (i, 0)),
        ),
        compiler_params=pltpu.CompilerParams(
            # Batch tiles are independent -> megacore sharding on v7x (2 TCs).
            dimension_semantics=("parallel",),
            vmem_limit_bytes=32 * 1024 * 1024,
        ),
        cost_estimate=cost,
    )(x, w1, b1, w2, b2)
    return out[:B]


def init_params(key, base_dim, mid_dim, num_classes=5, dtype=jnp.float32):
    """Deterministic init mimicking nn.Linear's uniform(-1/sqrt(fan_in), ...)."""
    k1, k2, k3, k4 = jax.random.split(key, 4)
    bound1 = 1.0 / math.sqrt(base_dim)
    bound2 = 1.0 / math.sqrt(mid_dim)
    w1 = jax.random.uniform(k1, (base_dim, mid_dim), dtype, -bound1, bound1)
    b1 = jax.random.uniform(k2, (1, mid_dim), dtype, -bound1, bound1)
    w2 = jax.random.uniform(k3, (mid_dim, num_classes), dtype, -bound2, bound2)
    b2 = jax.random.uniform(k4, (1, num_classes), dtype, -bound2, bound2)
    return w1, b1, w2, b2


if __name__ == "__main__":
    key = jax.random.PRNGKey(0)
    kx, kp, km = jax.random.split(key, 3)

    B = 20            # not a multiple of 8: exercises the padding/slicing path
    base_dim = 32
    mid_dim = 64
    num_classes = 5   # ClassifierHead_2 hard-codes num_classes=5

    x = jax.random.normal(kx, (B, base_dim), dtype=jnp.float32)
    mask = jax.random.bernoulli(km, 0.5, (B,))  # unused, as in reference forward
    w1, b1, w2, b2 = init_params(kp, base_dim, mid_dim, num_classes)

    out = classifier_head_2(x, mask, w1, b1, w2, b2)
    out = jax.block_until_ready(out)

    # Pure-JAX reference for sanity.
    h_ref = x @ w1 + b1
    h_ref = 0.5 * h_ref * (1.0 + lax.erf(h_ref * _INV_SQRT2))
    ref = h_ref @ w2 + b2
    assert out.shape == (B, num_classes)
    assert jnp.allclose(out, ref, atol=1e-5, rtol=1e-5)

    print("KERNEL_OK")
</pallas_src>

<mosaic_0001>
module attributes {stable_mosaic.version = 11 : i64} {
  func.func @_mlp_head_kernel(%arg0: i32, %arg1: memref<24x32xf32, #tpu.memory_space<vmem>>, %arg2: memref<32x64xf32, #tpu.memory_space<vmem>>, %arg3: memref<1x64xf32, #tpu.memory_space<vmem>>, %arg4: memref<64x5xf32, #tpu.memory_space<vmem>>, %arg5: memref<1x5xf32, #tpu.memory_space<vmem>>, %arg6: memref<24x5xf32, #tpu.memory_space<vmem>>) attributes {dimension_semantics = [#tpu.dimension_semantics<parallel>], iteration_bounds = array<i64: 1>, scalar_prefetch = 0 : i64, scratch_operands = 0 : i64, tpu.core_type = #tpu.core_type<tc>, window_params = [{transform_indices = @transform_0, window_bounds = array<i64: 24, 32>}, {pipeline_mode = #tpu.pipeline_mode<synchronous>, transform_indices = @transform_1, window_bounds = array<i64: 32, 64>}, {pipeline_mode = #tpu.pipeline_mode<synchronous>, transform_indices = @transform_2, window_bounds = array<i64: 1, 64>}, {pipeline_mode = #tpu.pipeline_mode<synchronous>, transform_indices = @transform_3, window_bounds = array<i64: 64, 5>}, {pipeline_mode = #tpu.pipeline_mode<synchronous>, transform_indices = @transform_4, window_bounds = array<i64: 1, 5>}, {transform_indices = @transform_5, window_bounds = array<i64: 24, 5>}]} {
    %c0 = arith.constant 0 : index
    %c0_0 = arith.constant 0 : index
    %0 = vector.load %arg1[%c0, %c0_0] : memref<24x32xf32, #tpu.memory_space<vmem>>, vector<24x32xf32>
    %c0_1 = arith.constant 0 : index
    %c0_2 = arith.constant 0 : index
    %1 = vector.load %arg2[%c0_1, %c0_2] : memref<32x64xf32, #tpu.memory_space<vmem>>, vector<32x64xf32>
    %cst = arith.constant dense<0.000000e+00> : vector<24x64xf32>
    %2 = tpu.matmul %0, %1, %cst {dimension_numbers = #tpu.dot_dimension_numbers<[1], [0], [0], [1], [0, 0, 1, 1], [], []>} : vector<24x32xf32>, vector<32x64xf32>, vector<24x64xf32> -> vector<24x64xf32>
    %c0_3 = arith.constant 0 : index
    %c0_4 = arith.constant 0 : index
    %3 = vector.load %arg3[%c0_3, %c0_4] : memref<1x64xf32, #tpu.memory_space<vmem>>, vector<1x64xf32>
    %4 = vector.broadcast %3 : vector<1x64xf32> to vector<24x64xf32>
    %5 = arith.addf %2, %4 : vector<24x64xf32>
    %cst_5 = arith.constant 5.000000e-01 : f32
    %6 = vector.broadcast %cst_5 : f32 to vector<24x64xf32>
    %7 = arith.mulf %6, %5 : vector<24x64xf32>
    %cst_6 = arith.constant 0.707106769 : f32
    %8 = vector.broadcast %cst_6 : f32 to vector<24x64xf32>
    %9 = arith.mulf %5, %8 : vector<24x64xf32>
    %10 = math.erf %9 : vector<24x64xf32>
    %cst_7 = arith.constant 1.000000e+00 : f32
    %11 = vector.broadcast %cst_7 : f32 to vector<24x64xf32>
    %12 = arith.addf %11, %10 : vector<24x64xf32>
    %13 = arith.mulf %7, %12 : vector<24x64xf32>
    %c0_8 = arith.constant 0 : index
    %c0_9 = arith.constant 0 : index
    %14 = vector.load %arg4[%c0_8, %c0_9] : memref<64x5xf32, #tpu.memory_space<vmem>>, vector<64x5xf32>
    %cst_10 = arith.constant dense<0.000000e+00> : vector<24x5xf32>
    %15 = tpu.matmul %13, %14, %cst_10 {dimension_numbers = #tpu.dot_dimension_numbers<[1], [0], [0], [1], [0, 0, 1, 1], [], []>} : vector<24x64xf32>, vector<64x5xf32>, vector<24x5xf32> -> vector<24x5xf32>
    %c0_11 = arith.constant 0 : index
    %c0_12 = arith.constant 0 : index
    %16 = vector.load %arg5[%c0_11, %c0_12] : memref<1x5xf32, #tpu.memory_space<vmem>>, vector<1x5xf32>
    %17 = vector.broadcast %16 : vector<1x5xf32> to vector<24x5xf32>
    %18 = arith.addf %15, %17 : vector<24x5xf32>
    %c0_13 = arith.constant 0 : index
    %c0_14 = arith.constant 0 : index
    %19 = vector.load %arg6[%c0_13, %c0_14] : memref<24x5xf32, #tpu.memory_space<vmem>>, vector<24x5xf32>
    tpu.vector_store %arg6[%c0_13, %c0_14], %18 {strides = array<i32>} : memref<24x5xf32, #tpu.memory_space<vmem>>, vector<24x5xf32>,
    return
  }
  func.func @transform_0(%arg0: i32) -> (i32, i32) {
    %c0_i32 = arith.constant 0 : i32
    %c0_i32_0 = arith.constant 0 : i32
    return %arg0, %c0_i32 : i32, i32
  }
  func.func @transform_1(%arg0: i32) -> (i32, i32) {
    %c0_i32 = arith.constant 0 : i32
    %c0_i32_0 = arith.constant 0 : i32
    %c0_i32_1 = arith.constant 0 : i32
    return %c0_i32, %c0_i32_0 : i32, i32
  }
  func.func @transform_2(%arg0: i32) -> (i32, i32) {
    %c0_i32 = arith.constant 0 : i32
    %c0_i32_0 = arith.constant 0 : i32
    %c0_i32_1 = arith.constant 0 : i32
    return %c0_i32, %c0_i32_0 : i32, i32
  }
  func.func @transform_3(%arg0: i32) -> (i32, i32) {
    %c0_i32 = arith.constant 0 : i32
    %c0_i32_0 = arith.constant 0 : i32
    %c0_i32_1 = arith.constant 0 : i32
    return %c0_i32, %c0_i32_0 : i32, i32
  }
  func.func @transform_4(%arg0: i32) -> (i32, i32) {
    %c0_i32 = arith.constant 0 : i32
    %c0_i32_0 = arith.constant 0 : i32
    %c0_i32_1 = arith.constant 0 : i32
    return %c0_i32, %c0_i32_0 : i32, i32
  }
  func.func @transform_5(%arg0: i32) -> (i32, i32) {
    %c0_i32 = arith.constant 0 : i32
    %c0_i32_0 = arith.constant 0 : i32
    return %arg0, %c0_i32 : i32, i32
  }
}

</mosaic_0001>

<llo_original>
// kernel: classifier_head_2.1
$region0: #{classifier_head_2.1}
  #allocation0 [shape = 'u32[]', space=smem, size = 0x4, offset = 0x4, fixed_abs, tag = 'smem constant byte address 0x4 - core index']
  #allocation1 [shape = 'u32[144,128]{1,0:T(1,128)}', space=vmem, size = 0x12000, scoped, tag = 'internal scratch']
  %s0 = inlined_call_operand.vmem [shape: f32[24,32], index: 0, kind: input, shape index: {}]
  %s1 = inlined_call_operand.vmem [shape: f32[32,64], index: 1, kind: input, shape index: {}]
  %s2 = inlined_call_operand.vmem [shape: f32[1,64], index: 2, kind: input, shape index: {}]
  %s3 = inlined_call_operand.vmem [shape: f32[64,5], index: 3, kind: input, shape index: {}]
  %s4 = inlined_call_operand.vmem [shape: f32[1,5], index: 4, kind: input, shape index: {}]
  %s5 = inlined_call_operand.vmem [shape: f32[24,5], index: 5, kind: output, shape index: {}]
  %s6 = sld [smem:[#allocation0]]
  $region30: #{classifier_head_2.1} parent=0
    _
  %s8 = ssub.s32 1, %s6
  %s9 = scalar_select 0, %s8, %s6
  // Predicated region
  $region2: #{classifier_head_2.1} parent=0 // pred_check
    _
  $region3: #{classifier_head_2.1} parent=0 // pred_check_branch
    %11 = sbr.rel (0) target = $region5
  $region4: #{classifier_head_2.1} parent=0 // pred_region
    _
  $region5: #{classifier_head_2.1} parent=0 // pred_fallthru
    _
  // Predicated region
  $region6: #{classifier_head_2.1} parent=0 // pred_check
    _
  $region7: #{classifier_head_2.1} parent=0 // pred_check_branch
    %13 = sbr.rel (0) target = $region9
  $region8: #{classifier_head_2.1} parent=0 // pred_region
    _
  $region9: #{classifier_head_2.1} parent=0 // pred_fallthru
    _
  // Predicated region
  $region10: #{classifier_head_2.1} parent=0 // pred_check
    _
  $region11: #{classifier_head_2.1} parent=0 // pred_check_branch
    %15 = sbr.rel (0) target = $region13
  $region12: #{classifier_head_2.1} parent=0 // pred_region
    _
  $region13: #{classifier_head_2.1} parent=0 // pred_fallthru
    _
  // Predicated region
  $region14: #{classifier_head_2.1} parent=0 // pred_check
    _
  $region15: #{classifier_head_2.1} parent=0 // pred_check_branch
    %17 = sbr.rel (0) target = $region17
  $region16: #{classifier_head_2.1} parent=0 // pred_region
    _
  $region17: #{classifier_head_2.1} parent=0 // pred_fallthru
    _
  // Predicated region
  $region18: #{classifier_head_2.1} parent=0 // pred_check
    _
  $region19: #{classifier_head_2.1} parent=0 // pred_check_branch
    %19 = sbr.rel (0) target = $region21
  $region20: #{classifier_head_2.1} parent=0 // pred_region
    _
  $region21: #{classifier_head_2.1} parent=0 // pred_fallthru
    _
  %v20 = vld [vmem:[%s0] sm:$0xff]
  %v21 = vld [vmem:[%s0 + $0x8] sm:$0xff]
  %v22 = vld [vmem:[%s0 + $0x10] sm:$0xff]
  %v23 = vld [vmem:[%s1] sm:$0xff]
  %v24 = vld [vmem:[%s1 + $0x8] sm:$0xff]
  %v25 = vld [vmem:[%s1 + $0x10] sm:$0xff]
  %v26 = vld [vmem:[%s1 + $0x18] sm:$0xff]
  %v27 = vld [vmem:[%s2] sm:$0x1]
  %v29 = vlaneseq
  %v30 = vshrl.u32 %v29, 7
  %v31 = vsub.s32 0, %v30
  %v32 = vrot.slane %v27, %v31
  %vm34 = vcmask 261120
  %v36 = vsel %vm34, %v20, 0
  %v39 = vsel %vm34, %v21, 0
  %v42 = vsel %vm34, %v22, 0
  %44 = vmatprep.subr.mxu0 0.0
  %45 = vmatpush1.msra.mxu0 %v23
  %46 = vmatprep.subr.mxu0 0.0
  %47 = vmatpush1.msra.mxu0 %v24
  %48 = vmatprep.subr.mxu0 0.0
  %49 = vmatpush1.msra.mxu0 %v25
  %50 = vmatprep.subr.mxu0 0.0
  %51 = vmatpush1.msra.mxu0 %v26
  %52 = vmatprep.subr.mxu0 0.0
  %53 = vmatpush1.msra.mxu0 0.0
  %54 = vmatprep.subr.mxu0 0.0
  %55 = vmatpush1.msra.mxu0 0.0
  %56 = vmatprep.subr.mxu0 0.0
  %57 = vmatpush1.msra.mxu0 0.0
  %58 = vmatprep.subr.mxu0 0.0
  %59 = vmatpush1.msra.mxu0 0.0
  %60 = vmatprep.subr.mxu0 0.0
  %61 = vmatpush1.msra.mxu0 0.0
  %62 = vmatprep.subr.mxu0 0.0
  %63 = vmatpush1.msra.mxu0 0.0
  %64 = vmatprep.subr.mxu0 0.0
  %65 = vmatpush1.msra.mxu0 0.0
  %66 = vmatprep.subr.mxu0 0.0
  %67 = vmatpush1.msra.mxu0 0.0
  %68 = vmatprep.subr.mxu0 0.0
  %69 = vmatpush1.msra.mxu0 0.0
  %70 = vmatprep.subr.mxu0 0.0
  %71 = vmatpush1.msra.mxu0 0.0
  %72 = vmatprep.subr.mxu0 0.0
  %73 = vmatpush1.msra.mxu0 0.0
  %74 = vmatprep.subr.mxu0 0.0
  %75 = vmatpush1.msra.mxu0 0.0
  %76 = vmatprep.subr.mxu0 0.0
  %77 = vmatpush1.msra.mxu0 0.0
  %78 = vmatprep.subr.mxu0 0.0
  %79 = vmatpush1.msra.mxu0 0.0
  %80 = vmatprep.subr.mxu0 0.0
  %81 = vmatpush1.msra.mxu0 0.0
  %82 = vmatprep.subr.mxu0 0.0
  %83 = vmatpush1.msra.mxu0 0.0
  %84 = vmatprep.subr.mxu0 0.0
  %85 = vmatpush1.msra.mxu0 0.0
  %86 = vmatprep.subr.mxu0 0.0
  %87 = vmatpush1.msra.mxu0 0.0
  %88 = vmatprep.subr.mxu0 0.0
  %89 = vmatpush1.msra.mxu0 0.0
  %90 = vmatprep.subr.mxu0 0.0
  %91 = vmatpush1.msra.mxu0 0.0
  %92 = vmatprep.subr.mxu0 0.0
  %93 = vmatpush1.msra.mxu0 0.0
  %94 = vmatprep.subr.mxu0 0.0
  %95 = vmatpush1.msra.mxu0 0.0
  %96 = vmatprep.subr.mxu0 0.0
  %97 = vmatpush1.msra.mxu0 0.0
  %98 = vmatprep.subr.mxu0 0.0
  %99 = vmatpush1.msra.mxu0 0.0
  %100 = vmatprep.subr.mxu0 0.0
  %101 = vmatpush1.msra.mxu0 0.0
  %102 = vmatprep.subr.mxu0 0.0
  %103 = vmatpush1.msra.mxu0 0.0
  %104 = vmatprep.subr.mxu0 0.0
  %105 = vmatpush1.msra.mxu0 0.0
  %106 = vmatprep.subr.mxu0 0.0
  %107 = vmatpush1.msra.mxu0 0.0
  %108 = vmatprep.mubr.f32.mxu0 0.0
  %109 = vmatmul.mubr.f32.gmra.mrb[0].mxu0 %v36
  %v110 = vpop.f32.mrb[0].mxu0
  %v111 = vadd.f32 %v32, %v110
  %v112 = vpop.f32.mrb[0].mxu0
  %113 = vmatprep.mubr.f32.mxu0 0.0
  %114 = vmatmul.mubr.f32.gmra.mrb[0].mxu0 %v39
  %v115 = vpop.f32.mrb[0].mxu0
  %v116 = vadd.f32 %v32, %v115
  %v117 = vpop.f32.mrb[0].mxu0
  %118 = vmatprep.mubr.f32.mxu0 0.0
  %119 = vmatmul.mubr.f32.gmra.mrb[0].mxu0 %v42
  %v120 = vpop.f32.mrb[0].mxu0
  %v121 = vadd.f32 %v32, %v120
  %v122 = vpop.f32.mrb[0].mxu0
  %123 = vdwg.mxu0
  %v124 = vmul.f32 %v111, 0.5
  %v125 = vmul.f32 %v116, 0.5
  %v126 = vmul.f32 %v121, 0.5
  %v127 = vmul.f32 %v111, 0.70710677
  %v128 = vmul.f32 %v116, 0.70710677
  %v129 = vmul.f32 %v121, 0.70710677
  %v130 = verf.f32.pop %v127
  %v131 = verf.f32.pop %v128
  %v132 = verf.f32.pop %v129
  %v133 = vadd.f32 %v130, 1.0
  %v134 = vadd.f32 %v131, 1.0
  %v135 = vadd.f32 %v132, 1.0
  %v136 = vmul.f32 %v124, %v133
  %v137 = vmul.f32 %v125, %v134
  %v138 = vmul.f32 %v126, %v135
  %v139 = vld [vmem:[%s3] sm:$0xff]
  %v140 = vld [vmem:[%s3 + $0x8] sm:$0xff]
  %v141 = vld [vmem:[%s3 + $0x10] sm:$0xff]
  %v142 = vld [vmem:[%s3 + $0x18] sm:$0xff]
  %v143 = vld [vmem:[%s3 + $0x20] sm:$0xff]
  %v144 = vld [vmem:[%s3 + $0x28] sm:$0xff]
  %v145 = vld [vmem:[%s3 + $0x30] sm:$0xff]
  %v146 = vld [vmem:[%s3 + $0x38] sm:$0xff]
  %v147 = vld [vmem:[%s4] sm:$0x1]
  %v149 = vlaneseq
  %v150 = vshrl.u32 %v149, 7
  %v151 = vsub.s32 0, %v150
  %v152 = vrot.slane %v147, %v151
  %vm154 = vcmask 523264
  %v156 = vsel %vm154, %v136, 0
  %v159 = vsel %vm154, %v137, 0
  %v162 = vsel %vm154, %v138, 0
  %164 = vmatprep.subr.mxu0 0.0
  %165 = vmatpush1.msra.mxu0 %v139
  %166 = vmatprep.subr.mxu0 0.0
  %167 = vmatpush1.msra.mxu0 %v140
  %168 = vmatprep.subr.mxu0 0.0
  %169 = vmatpush1.msra.mxu0 %v141
  %170 = vmatprep.subr.mxu0 0.0
  %171 = vmatpush1.msra.mxu0 %v142
  %172 = vmatprep.subr.mxu0 0.0
  %173 = vmatpush1.msra.mxu0 %v143
  %174 = vmatprep.subr.mxu0 0.0
  %175 = vmatpush1.msra.mxu0 %v144
  %176 = vmatprep.subr.mxu0 0.0
  %177 = vmatpush1.msra.mxu0 %v145
  %178 = vmatprep.subr.mxu0 0.0
  %179 = vmatpush1.msra.mxu0 %v146
  %180 = vmatprep.subr.mxu0 0.0
  %181 = vmatpush1.msra.mxu0 0.0
  %182 = vmatprep.subr.mxu0 0.0
  %183 = vmatpush1.msra.mxu0 0.0
  %184 = vmatprep.subr.mxu0 0.0
  %185 = vmatpush1.msra.mxu0 0.0
  %186 = vmatprep.subr.mxu0 0.0
  %187 = vmatpush1.msra.mxu0 0.0
  %188 = vmatprep.subr.mxu0 0.0
  %189 = vmatpush1.msra.mxu0 0.0
  %190 = vmatprep.subr.mxu0 0.0
  %191 = vmatpush1.msra.mxu0 0.0
  %192 = vmatprep.subr.mxu0 0.0
  %193 = vmatpush1.msra.mxu0 0.0
  %194 = vmatprep.subr.mxu0 0.0
  %195 = vmatpush1.msra.mxu0 0.0
  %196 = vmatprep.subr.mxu0 0.0
  %197 = vmatpush1.msra.mxu0 0.0
  %198 = vmatprep.subr.mxu0 0.0
  %199 = vmatpush1.msra.mxu0 0.0
  %200 = vmatprep.subr.mxu0 0.0
  %201 = vmatpush1.msra.mxu0 0.0
  %202 = vmatprep.subr.mxu0 0.0
  %203 = vmatpush1.msra.mxu0 0.0
  %204 = vmatprep.subr.mxu0 0.0
  %205 = vmatpush1.msra.mxu0 0.0
  %206 = vmatprep.subr.mxu0 0.0
  %207 = vmatpush1.msra.mxu0 0.0
  %208 = vmatprep.subr.mxu0 0.0
  %209 = vmatpush1.msra.mxu0 0.0
  %210 = vmatprep.subr.mxu0 0.0
  %211 = vmatpush1.msra.mxu0 0.0
  %212 = vmatprep.subr.mxu0 0.0
  %213 = vmatpush1.msra.mxu0 0.0
  %214 = vmatprep.subr.mxu0 0.0
  %215 = vmatpush1.msra.mxu0 0.0
  %216 = vmatprep.subr.mxu0 0.0
  %217 = vmatpush1.msra.mxu0 0.0
  %218 = vmatprep.subr.mxu0 0.0
  %219 = vmatpush1.msra.mxu0 0.0
  %220 = vmatprep.subr.mxu0 0.0
  %221 = vmatpush1.msra.mxu0 0.0
  %222 = vmatprep.subr.mxu0 0.0
  %223 = vmatpush1.msra.mxu0 0.0
  %224 = vmatprep.subr.mxu0 0.0
  %225 = vmatpush1.msra.mxu0 0.0
  %226 = vmatprep.subr.mxu0 0.0
  %227 = vmatpush1.msra.mxu0 0.0
  %228 = vmatprep.mubr.f32.mxu0 0.0
  %229 = vmatmul.mubr.f32.gmra.mrb[0].mxu0 %v156
  %v230 = vpop.f32.mrb[0].mxu0
  %v231 = vadd.f32 %v152, %v230
  %v232 = vpop.f32.mrb[0].mxu0
  %233 = vmatprep.mubr.f32.mxu0 0.0
  %234 = vmatmul.mubr.f32.gmra.mrb[0].mxu0 %v159
  %v235 = vpop.f32.mrb[0].mxu0
  %v236 = vadd.f32 %v152, %v235
  %v237 = vpop.f32.mrb[0].mxu0
  %238 = vmatprep.mubr.f32.mxu0 0.0
  %239 = vmatmul.mubr.f32.gmra.mrb[0].mxu0 %v162
  %v240 = vpop.f32.mrb[0].mxu0
  %v241 = vadd.f32 %v152, %v240
  %v242 = vpop.f32.mrb[0].mxu0
  %243 = vdwg.mxu0
  %vm244 = vcmask 39936
  %245 = vst.msk [vmem:[%s5] sm:$0xff] %vm244, %v231
  %246 = vst.msk [vmem:[%s5 + $0x8] sm:$0xff] %vm244, %v236
  %247 = vst.msk [vmem:[%s5 + $0x10] sm:$0xff] %vm244, %v241
  // Predicated region
  $region22: #{classifier_head_2.1} parent=0 // pred_check
    _
  $region23: #{classifier_head_2.1} parent=0 // pred_check_branch
    %249 = sbr.rel (0) target = $region25
  $region24: #{classifier_head_2.1} parent=0 // pred_region
    _
  $region25: #{classifier_head_2.1} parent=0 // pred_fallthru
    _
  // Predicated region
  $region26: #{classifier_head_2.1} parent=0 // pred_check
    _
  $region27: #{classifier_head_2.1} parent=0 // pred_check_branch
    %251 = sbr.rel (0) target = $region29
  $region28: #{classifier_head_2.1} parent=0 // pred_region
    _
  $region29: #{classifier_head_2.1} parent=0 // pred_fallthru
    _

</llo_original>
